<compile_context>
chip_gen: v7x
topology: tpu7x:2x2x1
jax: 0.10.0
libtpu: 0.0.40
codegen_flags: <defaults>
</compile_context>

<pallas_src>
import functools

import jax
import jax.numpy as jnp
from jax.experimental import pallas as pl
from jax.experimental.pallas import tpu as pltpu

EPS = 1e-5


def _round_up(n, m):
    return ((n + m - 1) // m) * m


def _stats_accum_kernel(x_ref, shift_ref, s_ref, q_ref, *, tf_total, t_tile):
    """Masked, shifted, single-pass sum / sum-of-squares accumulation.

    x_ref:     (b_tile, t_tile, DF)      streamed input block (time axis tiled)
    shift_ref: (b_tile, 1, DF) f32       per-(batch, lane) shift (first data row)
    s_ref:     (b_tile, 1, DF) f32  OUT  sum(x - shift)      (resident over t)
    q_ref:     (b_tile, 1, DF) f32  OUT  sum((x - shift)^2)  (resident over t)
    """
    t = pl.program_id(1)

    @pl.when(t == 0)
    def _():
        s_ref[...] = jnp.zeros_like(s_ref)
        q_ref[...] = jnp.zeros_like(q_ref)

    x = x_ref[...].astype(jnp.float32)          # (b_tile, t_tile, DF)
    xs = x - shift_ref[...]                     # sublane broadcast of the shift

    # Mask rows of the last (partial) time block: global row index < Tf.
    b_tile = x.shape[0]
    row = jax.lax.broadcasted_iota(jnp.int32, (b_tile, t_tile, 1), 1)
    valid = (row + t * t_tile) < tf_total
    xs = jnp.where(valid, xs, 0.0)              # lane-broadcast mask; NaN-safe

    s_ref[...] += jnp.sum(xs, axis=1, keepdims=True)
    q_ref[...] += jnp.sum(xs * xs, axis=1, keepdims=True)


def statistics_pooling(x, key, *, t_tile_target=512, x_tile_bytes=4 << 20):
    """x: [B, T, D] -> pooled stats [B, 1, 2*D] = (mean + noise, std + eps)."""
    B, T, D = x.shape
    itemsize = x.dtype.itemsize

    # ---- optional lane fold for small feature dims (restore lane density) ----
    fold = 1
    if D < 128 and 128 % D == 0:
        k = 128 // D
        if T % k == 0:
            fold = k
    Tf = T // fold                      # folded time length (rows per lane group)
    DF = D * fold                       # folded feature width (lane axis)
    xf = x.reshape(B, Tf, DF)           # contiguous reshape: free in XLA

    # Per-(batch, folded-lane) shift = first folded row; used for numerically
    # stable shifted-variance accumulation.  Tiny (B, DF) read done by XLA.
    shift = xf[:, 0:1, :].astype(jnp.float32)            # (B, 1, DF)

    # ---- tile selection (fixed tiles + cdiv grid + masking; no divisor hunt) ----
    sub = 8 * max(1, 4 // itemsize)                      # 8 f32 / 16 bf16 / 32 int8
    t_tile = min(_round_up(t_tile_target, sub), _round_up(Tf, sub))
    while t_tile > sub and t_tile * DF * itemsize > x_tile_bytes:
        t_tile = _round_up(t_tile // 2, sub)             # very wide D: shrink tile
    row_bytes = t_tile * DF * itemsize
    b_tile = max(1, min(B, 8, x_tile_bytes // max(row_bytes, 1)))
    if B >= 2:
        # keep >= 2 steps on the "parallel" batch axis (v7x has 2 TensorCores)
        b_tile = min(b_tile, max(1, B // 2))
    grid = (pl.cdiv(B, b_tile), pl.cdiv(Tf, t_tile))

    kernel = functools.partial(_stats_accum_kernel, tf_total=Tf, t_tile=t_tile)

    s, q = pl.pallas_call(
        kernel,
        out_shape=(
            jax.ShapeDtypeStruct((B, 1, DF), jnp.float32),
            jax.ShapeDtypeStruct((B, 1, DF), jnp.float32),
        ),
        grid_spec=pltpu.PrefetchScalarGridSpec(
            num_scalar_prefetch=0,
            grid=grid,
            in_specs=[
                pl.BlockSpec((b_tile, t_tile, DF), lambda b, t: (b, t, 0)),
                pl.BlockSpec((b_tile, 1, DF), lambda b, t: (b, 0, 0)),
            ],
            out_specs=[
                pl.BlockSpec((b_tile, 1, DF), lambda b, t: (b, 0, 0)),
                pl.BlockSpec((b_tile, 1, DF), lambda b, t: (b, 0, 0)),
            ],
        ),
        compiler_params=pltpu.CompilerParams(
            dimension_semantics=("parallel", "arbitrary"),
        ),
        cost_estimate=pl.CostEstimate(
            flops=3 * B * T * D,
            transcendentals=0,
            bytes_accessed=B * T * D * itemsize + 3 * B * DF * 4,
        ),
    )(xf, shift)

    # ---- tiny O(B*D) finalization in plain (fused) XLA ----
    k = fold
    nf = jnp.float32(Tf)                # samples per lane group
    n = jnp.float32(T)
    S = s.reshape(B, k, D)
    Q = q.reshape(B, k, D)
    C = shift.reshape(B, k, D)

    mean = (S + nf * C).sum(axis=1) / n                  # (B, D)
    dc = C - mean[:, None, :]
    m2 = (Q + 2.0 * dc * S + nf * dc * dc).sum(axis=1)   # sum (x - mean)^2
    var = m2 / (n - 1.0)                                 # unbiased; NaN if T == 1 (torch too)
    std = jnp.sqrt(jnp.maximum(var, 0.0))

    # Gaussian noise exactly mirroring _get_gauss_noise (eps * (-8*g + 9)).
    g = jax.random.normal(key, (B, D), dtype=jnp.float32)
    g = g - jnp.min(g)
    g = g / jnp.max(g)
    gnoise = EPS * ((1.0 - 9.0) * g + 9.0)

    mean = mean + gnoise
    std = std + EPS
    pooled = jnp.concatenate([mean, std], axis=1)[:, None, :]
    return pooled.astype(x.dtype)


def _reference(x, key):
    """Pure-JAX reference of the same forward pass (lengths=None)."""
    xf = x.astype(jnp.float32)
    B, T, D = x.shape
    mean = jnp.mean(xf, axis=1)
    std = jnp.std(xf, axis=1, ddof=1)
    g = jax.random.normal(key, (B, D), dtype=jnp.float32)
    g = g - jnp.min(g)
    g = g / jnp.max(g)
    gnoise = EPS * ((1.0 - 9.0) * g + 9.0)
    mean = mean + gnoise
    std = std + EPS
    return jnp.concatenate([mean, std], axis=1)[:, None, :].astype(x.dtype)


if __name__ == "__main__":
    root = jax.random.PRNGKey(0)

    def run_case(B, T, D, dtype, atol, rtol):
        kx, kn = jax.random.split(jax.random.fold_in(root, B * 100000 + T * 100 + D))
        x = jax.random.normal(kx, (B, T, D), dtype=jnp.float32).astype(dtype)
        out = jax.block_until_ready(statistics_pooling(x, kn))
        ref = _reference(x, kn)
        assert out.shape == (B, 1, 2 * D), out.shape
        ok = jnp.allclose(out.astype(jnp.float32), ref.astype(jnp.float32),
                          atol=atol, rtol=rtol)
        err = float(jnp.max(jnp.abs(out.astype(jnp.float32) - ref.astype(jnp.float32))))
        assert bool(ok), (B, T, D, str(dtype), err)

    # small canonical shape (D < 128 -> lane-fold path exercised)
    run_case(2, 8, 32, jnp.float32, 1e-4, 1e-4)
    # awkward shape: prime-ish B/T, no fold, masked time remainder + partial batch block
    run_case(5, 37, 48, jnp.float32, 1e-4, 1e-4)
    # packed dtype: bf16 sublane granularity (t_tile multiple of 16) + fold
    run_case(2, 64, 32, jnp.bfloat16, 2e-2, 2e-2)

    print("KERNEL_OK")
</pallas_src>

<mosaic_0001>
module attributes {stable_mosaic.version = 11 : i64} {
  func.func @_stats_accum_kernel(%arg0: i32, %arg1: i32, %arg2: memref<1x8x128xf32, #tpu.memory_space<vmem>>, %arg3: memref<1x1x128xf32, #tpu.memory_space<vmem>>, %arg4: memref<1x1x128xf32, #tpu.memory_space<vmem>>, %arg5: memref<1x1x128xf32, #tpu.memory_space<vmem>>) attributes {dimension_semantics = [#tpu.dimension_semantics<parallel>, #tpu.dimension_semantics<arbitrary>], iteration_bounds = array<i64: 2, 1>, scalar_prefetch = 0 : i64, scratch_operands = 0 : i64, tpu.core_type = #tpu.core_type<tc>, window_params = [{transform_indices = @transform_0, window_bounds = array<i64: 1, 8, 128>}, {transform_indices = @transform_1, window_bounds = array<i64: 1, 1, 128>}, {transform_indices = @transform_2, window_bounds = array<i64: 1, 1, 128>}, {transform_indices = @transform_3, window_bounds = array<i64: 1, 1, 128>}]} {
    %c0_i32 = arith.constant 0 : i32
    %0 = arith.cmpi eq, %arg1, %c0_i32 : i32
    %1 = arith.extui %0 : i1 to i32
    %c0_i32_0 = arith.constant 0 : i32
    %2 = arith.cmpi ne, %1, %c0_i32_0 : i32
    scf.if %2 {
      %cst_20 = arith.constant 0.000000e+00 : f32
      %28 = vector.broadcast %cst_20 : f32 to vector<1x1x128xf32>
      %c0_21 = arith.constant 0 : index
      %c0_22 = arith.constant 0 : index
      %c0_23 = arith.constant 0 : index
      %29 = vector.load %arg4[%c0_21, %c0_22, %c0_23] : memref<1x1x128xf32, #tpu.memory_space<vmem>>, vector<1x1x128xf32>
      tpu.vector_store %arg4[%c0_21, %c0_22, %c0_23], %28 {strides = array<i32>} : memref<1x1x128xf32, #tpu.memory_space<vmem>>, vector<1x1x128xf32>,
      %cst_24 = arith.constant 0.000000e+00 : f32
      %30 = vector.broadcast %cst_24 : f32 to vector<1x1x128xf32>
      %c0_25 = arith.constant 0 : index
      %c0_26 = arith.constant 0 : index
      %c0_27 = arith.constant 0 : index
      %31 = vector.load %arg5[%c0_25, %c0_26, %c0_27] : memref<1x1x128xf32, #tpu.memory_space<vmem>>, vector<1x1x128xf32>
      tpu.vector_store %arg5[%c0_25, %c0_26, %c0_27], %30 {strides = array<i32>} : memref<1x1x128xf32, #tpu.memory_space<vmem>>, vector<1x1x128xf32>,
    } else {
    }
    %c0 = arith.constant 0 : index
    %c0_1 = arith.constant 0 : index
    %c0_2 = arith.constant 0 : index
    %3 = vector.load %arg2[%c0, %c0_1, %c0_2] : memref<1x8x128xf32, #tpu.memory_space<vmem>>, vector<1x8x128xf32>
    %c0_3 = arith.constant 0 : index
    %c0_4 = arith.constant 0 : index
    %c0_5 = arith.constant 0 : index
    %4 = vector.load %arg3[%c0_3, %c0_4, %c0_5] : memref<1x1x128xf32, #tpu.memory_space<vmem>>, vector<1x1x128xf32>
    %5 = vector.broadcast %4 : vector<1x1x128xf32> to vector<1x8x128xf32>
    %6 = arith.subf %3, %5 : vector<1x8x128xf32>
    %7 = tpu.iota {dimensions = array<i32: 1>} : vector<1x8x1xi32>
    %c8_i32 = arith.constant 8 : i32
    %8 = arith.muli %arg1, %c8_i32 : i32
    %9 = vector.broadcast %8 : i32 to vector<1x8x1xi32>
    %10 = arith.addi %7, %9 : vector<1x8x1xi32>
    %c2_i32 = arith.constant 2 : i32
    %11 = vector.broadcast %c2_i32 : i32 to vector<1x8x1xi32>
    %12 = arith.cmpi slt, %10, %11 : vector<1x8x1xi32>
    %cst = arith.constant 0.000000e+00 : f32
    %13 = vector.shape_cast %12 : vector<1x8x1xi1> to vector<1x8x1xi1>
    %14 = vector.broadcast %13 : vector<1x8x1xi1> to vector<1x8x128xi1>
    %15 = vector.broadcast %cst : f32 to vector<1x8x128xf32>
    %16 = arith.select %14, %6, %15 : vector<1x8x128xi1>, vector<1x8x128xf32>
    %c0_6 = arith.constant 0 : index
    %c0_7 = arith.constant 0 : index
    %c0_8 = arith.constant 0 : index
    %17 = vector.load %arg4[%c0_6, %c0_7, %c0_8] : memref<1x1x128xf32, #tpu.memory_space<vmem>>, vector<1x1x128xf32>
    %cst_9 = arith.constant dense<0.000000e+00> : vector<1x128xf32>
    %18 = vector.multi_reduction <add>, %16, %cst_9 [1] : vector<1x8x128xf32> to vector<1x128xf32>
    %19 = vector.shape_cast %18 : vector<1x128xf32> to vector<1x1x128xf32>
    %20 = arith.addf %17, %19 : vector<1x1x128xf32>
    %c0_10 = arith.constant 0 : index
    %c0_11 = arith.constant 0 : index
    %c0_12 = arith.constant 0 : index
    %21 = vector.load %arg4[%c0_10, %c0_11, %c0_12] : memref<1x1x128xf32, #tpu.memory_space<vmem>>, vector<1x1x128xf32>
    tpu.vector_store %arg4[%c0_10, %c0_11, %c0_12], %20 {strides = array<i32>} : memref<1x1x128xf32, #tpu.memory_space<vmem>>, vector<1x1x128xf32>,
    %c0_13 = arith.constant 0 : index
    %c0_14 = arith.constant 0 : index
    %c0_15 = arith.constant 0 : index
    %22 = vector.load %arg5[%c0_13, %c0_14, %c0_15] : memref<1x1x128xf32, #tpu.memory_space<vmem>>, vector<1x1x128xf32>
    %23 = arith.mulf %16, %16 : vector<1x8x128xf32>
    %cst_16 = arith.constant dense<0.000000e+00> : vector<1x128xf32>
    %24 = vector.multi_reduction <add>, %23, %cst_16 [1] : vector<1x8x128xf32> to vector<1x128xf32>
    %25 = vector.shape_cast %24 : vector<1x128xf32> to vector<1x1x128xf32>
    %26 = arith.addf %22, %25 : vector<1x1x128xf32>
    %c0_17 = arith.constant 0 : index
    %c0_18 = arith.constant 0 : index
    %c0_19 = arith.constant 0 : index
    %27 = vector.load %arg5[%c0_17, %c0_18, %c0_19] : memref<1x1x128xf32, #tpu.memory_space<vmem>>, vector<1x1x128xf32>
    tpu.vector_store %arg5[%c0_17, %c0_18, %c0_19], %26 {strides = array<i32>} : memref<1x1x128xf32, #tpu.memory_space<vmem>>, vector<1x1x128xf32>,
    return
  }
  func.func @transform_0(%arg0: i32, %arg1: i32) -> (i32, i32, i32) {
    %c0_i32 = arith.constant 0 : i32
    %c0_i32_0 = arith.constant 0 : i32
    return %arg0, %arg1, %c0_i32 : i32, i32, i32
  }
  func.func @transform_1(%arg0: i32, %arg1: i32) -> (i32, i32, i32) {
    %c0_i32 = arith.constant 0 : i32
    %c0_i32_0 = arith.constant 0 : i32
    %c0_i32_1 = arith.constant 0 : i32
    return %arg0, %c0_i32, %c0_i32_0 : i32, i32, i32
  }
  func.func @transform_2(%arg0: i32, %arg1: i32) -> (i32, i32, i32) {
    %c0_i32 = arith.constant 0 : i32
    %c0_i32_0 = arith.constant 0 : i32
    %c0_i32_1 = arith.constant 0 : i32
    return %arg0, %c0_i32, %c0_i32_0 : i32, i32, i32
  }
  func.func @transform_3(%arg0: i32, %arg1: i32) -> (i32, i32, i32) {
    %c0_i32 = arith.constant 0 : i32
    %c0_i32_0 = arith.constant 0 : i32
    %c0_i32_1 = arith.constant 0 : i32
    return %arg0, %c0_i32, %c0_i32_0 : i32, i32, i32
  }
}

</mosaic_0001>

<llo_original>
// kernel: tpu_custom_call.1
$region0: #{tpu_custom_call.1}
  #allocation0 [shape = 'u32[]', space=smem, size = 0x4, offset = 0x4, fixed_abs, tag = 'smem constant byte address 0x4 - core index']
  #allocation1 [shape = 'u32[144,128]{1,0:T(1,128)}', space=vmem, size = 0x12000, scoped, tag = 'internal scratch']
  %s0 = inlined_call_operand.hbm [shape: f32[2,2,128], index: 0, kind: input, shape index: {}]
  %s1 = inlined_call_operand.vmem [shape: f32[2,1,128], index: 1, kind: input, shape index: {}]
  %s2 = inlined_call_operand.hbm [shape: f32[2,1,128], index: 2, kind: output, shape index: {0}]
  %s3 = inlined_call_operand.hbm [shape: f32[2,1,128], index: 3, kind: output, shape index: {1}]
  %4 = xla_tuple %s2, %s3
  %s5 = sld [smem:[#allocation0]]
  $region57: #{tpu_custom_call.1} parent=0
    _
  %s7 = ssub.s32 1, %s5
  %s8 = scalar_select 0, %s7, %s5
  $region1: #{tpu_custom_call.1} parent=0
    #allocation2 [shape = 'u8[8192]{0}', space=vmem, size = 0x2000, scoped, tag = 'input window, operand 0']
    #allocation3 [shape = 's32[2]{0}', space=sflag, size = 0x8, scoped, tag = 'scoped memory for tpu_custom_call.1']
    #allocation4 [shape = 's32[2]{0}', space=sflag, size = 0x8, scoped, tag = 'scoped memory for tpu_custom_call.1']
    #allocation5 [shape = 'u8[1024]{0}', space=vmem, size = 0x400, scoped, tag = 'output window, operand 0']
    #allocation6 [shape = 'u8[1024]{0}', space=vmem, size = 0x400, scoped, tag = 'output window, operand 1']
    #allocation7 [shape = 's32[2]{0}', space=sflag, size = 0x8, scoped, tag = 'scoped memory for tpu_custom_call.1']
    %9 = vsyncpa [#allocation3], 0
    %s10 = scalar_lea.sflag [#allocation3], 1
    %11 = vsyncpa %s10, 0
    %12 = vsyncpa [#allocation4], 0
    %s13 = scalar_lea.sflag [#allocation4], 1
    %14 = vsyncpa %s13, 0
    %15 = vsyncpa [#allocation7], 0
    %s16 = scalar_lea.sflag [#allocation7], 1
    %17 = vsyncpa %s16, 0
    loop: start=0, step=1, limit=4
    $region2: #{tpu_custom_call.1} parent=1 // loop_pre_header
      _
    $region3: #{tpu_custom_call.1} parent=1 // loop_header
      %s19 = sphi 0, %s23
      %p20 = scmp.ge.s32.totalorder %s19, 4
      %s26 = sphi 0, %s38
      %s27 = sphi 0, %s34
      %s28 = sphi 0, %s26
      %s29 = sphi 0, %s27
      %s30 = sphi 0, %s28
      %s31 = sphi 0, %s29
      %s43 = sphi 0, %s45
      %s46 = sphi 0, %s43
      %s47 = sphi 0, %s46
      %s63 = sphi 0, %s47
      %s69 = sphi 0, %s71
      %s72 = sphi 0, %s69
      %s73 = sphi 0, %s72
      %s89 = sphi 0, %s73
      %s95 = sphi 0, %s97
      %s98 = sphi 0, %s95
      %s99 = sphi 0, %s98
      %s115 = sphi 0, %s99
      %s121 = sphi 0, %s123
      %s124 = sphi 0, %s121
      %s125 = sphi 0, %s124
      %s141 = sphi 0, %s125
    $region4: #{tpu_custom_call.1} parent=1 // loop_header_branch
      %22 = sbr.rel (%p20) target = $region8
    $region5: #{tpu_custom_call.1} parent=1 // loop_body
      %s24 = ssub.s32 %s19, 1
      %s25 = ssub.s32 %s19, 2
      %s32 = sadd.s32 1, %s27
      %p33 = scmp.ge.s32.totalorder %s32, 1
      %s34 = scalar_select %p33, 0, %s32
      %s35 = sadd.s32 1, %s26
      %s36 = scalar_select %p33, %s35, %s26
      %p37 = scmp.ge.s32.totalorder %s36, 2
      %s38 = scalar_select %p37, 0, %s36
      %s39 = ssub.s32 %s26, %s38
      %s40 = ssub.s32 %s27, %s34
      %s41 = sor.u32 %s39, %s40
      %p42 = scmp.eq.s32.totalorder %s41, 0
      %s44 = sadd.s32 %s43, 1
      %s45 = scalar_select %p42, %s43, %s44
      %p48 = pneg %p42
      %p49 = scmp.eq.s32.totalorder %s19, 1
      %p50 = por %p48, %p49
      %p51 = scmp.ne.s32.totalorder %s43, %s46
      %p52 = scmp.eq.s32.totalorder %s19, 0
      %p53 = por %p51, %p52
      %p54 = scmp.ne.s32.totalorder %s43, %s46
      %p55 = scmp.eq.s32.totalorder %s24, 1
      %p56 = por %p54, %p55
      %p57 = scmp.ne.s32.totalorder %s46, %s47
      %p58 = scmp.eq.s32.totalorder %s24, 0
      %p59 = por %p57, %p58
      %p60 = scmp.ne.s32.totalorder %s46, %s47
      %p61 = scmp.eq.s32.totalorder %s25, 1
      %p62 = por %p60, %p61
      %p64 = scmp.ne.s32.totalorder %s47, %s63
      %p65 = scmp.eq.s32.totalorder %s25, 0
      %p66 = por %p64, %p65
      %s67 = ssub.s32 %s26, %s38
      %p68 = scmp.eq.s32.totalorder %s67, 0
      %s70 = sadd.s32 %s69, 1
      %s71 = scalar_select %p68, %s69, %s70
      %p74 = pneg %p68
      %p75 = scmp.eq.s32.totalorder %s19, 1
      %p76 = por %p74, %p75
      %p77 = scmp.ne.s32.totalorder %s69, %s72
      %p78 = scmp.eq.s32.totalorder %s19, 0
      %p79 = por %p77, %p78
      %p80 = scmp.ne.s32.totalorder %s69, %s72
      %p81 = scmp.eq.s32.totalorder %s24, 1
      %p82 = por %p80, %p81
      %p83 = scmp.ne.s32.totalorder %s72, %s73
      %p84 = scmp.eq.s32.totalorder %s24, 0
      %p85 = por %p83, %p84
      %p86 = scmp.ne.s32.totalorder %s72, %s73
      %p87 = scmp.eq.s32.totalorder %s25, 1
      %p88 = por %p86, %p87
      %p90 = scmp.ne.s32.totalorder %s73, %s89
      %p91 = scmp.eq.s32.totalorder %s25, 0
      %p92 = por %p90, %p91
      %s93 = ssub.s32 %s26, %s38
      %p94 = scmp.eq.s32.totalorder %s93, 0
      %s96 = sadd.s32 %s95, 1
      %s97 = scalar_select %p94, %s95, %s96
      %p100 = pneg %p94
      %p101 = scmp.eq.s32.totalorder %s19, 1
      %p102 = por %p100, %p101
      %p103 = scmp.ne.s32.totalorder %s95, %s98
      %p104 = scmp.eq.s32.totalorder %s19, 0
      %p105 = por %p103, %p104
      %p106 = scmp.ne.s32.totalorder %s95, %s98
      %p107 = scmp.eq.s32.totalorder %s24, 1
      %p108 = por %p106, %p107
      %p109 = scmp.ne.s32.totalorder %s98, %s99
      %p110 = scmp.eq.s32.totalorder %s24, 0
      %p111 = por %p109, %p110
      %p112 = scmp.ne.s32.totalorder %s98, %s99
      %p113 = scmp.eq.s32.totalorder %s25, 1
      %p114 = por %p112, %p113
      %p116 = scmp.ne.s32.totalorder %s99, %s115
      %p117 = scmp.eq.s32.totalorder %s25, 0
      %p118 = por %p116, %p117
      %s119 = ssub.s32 %s26, %s38
      %p120 = scmp.eq.s32.totalorder %s119, 0
      %s122 = sadd.s32 %s121, 1
      %s123 = scalar_select %p120, %s121, %s122
      %p126 = pneg %p120
      %p127 = scmp.eq.s32.totalorder %s19, 1
      %p128 = por %p126, %p127
      %p129 = scmp.ne.s32.totalorder %s121, %s124
      %p130 = scmp.eq.s32.totalorder %s19, 0
      %p131 = por %p129, %p130
      %p132 = scmp.ne.s32.totalorder %s121, %s124
      %p133 = scmp.eq.s32.totalorder %s24, 1
      %p134 = por %p132, %p133
      %p135 = scmp.ne.s32.totalorder %s124, %s125
      %p136 = scmp.eq.s32.totalorder %s24, 0
      %p137 = por %p135, %p136
      %p138 = scmp.ne.s32.totalorder %s124, %s125
      %p139 = scmp.eq.s32.totalorder %s25, 1
      %p140 = por %p138, %p139
      %p142 = scmp.ne.s32.totalorder %s125, %s141
      %p143 = scmp.eq.s32.totalorder %s25, 0
      %p144 = por %p142, %p143
      %p145 = scmp.le.s32.totalorder 1, %s19
      %p146 = scmp.lt.s32.totalorder %s19, 3
      %p147 = pnand %p145, %p146
      %p148 = pneg %p147
      // Predicated region
      $region9: #{tpu_custom_call.1} parent=5 // pred_check
        _
      $region10: #{tpu_custom_call.1} parent=5 // pred_check_branch
        %150 = sbr.rel (%p147) target = $region12
      $region11: #{tpu_custom_call.1} parent=5 // pred_region
        %s151 = ssub.s32 %s19, 1
      $region12: #{tpu_custom_call.1} parent=5 // pred_fallthru
        _
      %p152 = scmp.lt.s32.totalorder %s19, 2
      // Predicated region
      $region13: #{tpu_custom_call.1} parent=5 // pred_check
        %p153 = pneg %p152
      $region14: #{tpu_custom_call.1} parent=5 // pred_check_branch
        %155 = sbr.rel (%p153) target = $region16
      $region15: #{tpu_custom_call.1} parent=5 // pred_region
        // Predicated region
        $region17: #{tpu_custom_call.1} parent=15 // pred_check
          %p156 = pneg %p53
        $region18: #{tpu_custom_call.1} parent=15 // pred_check_branch
          %158 = sbr.rel (%p156) target = $region20
        $region19: #{tpu_custom_call.1} parent=15 // pred_region
          %s159 = sand.u32 %s43, 1
          %s160 = scalar_lea.sflag [#allocation3], %s159
          %s161 = sand.u32 %s43, 1
          %s162 = smul.addr %s161, 8
          %s163 = scalar_lea.vmem [#allocation2], %s162
          %s164 = smul.u32 4, %s27
          %s165 = ssub.s32 1, %s164
          %s166 = smul.u32 32, %s165
          %s168 = ssub.s32 128, %s166
          %169 = vsyncadd %s160, %s168
          %p170 = scmp.ne.s32.totalorder 0, %s166
          %s171 = sadd.s32 %s164, %s26
          %s172 = smul.addr %s171, 32
          %s173 = scalar_lea.hbm %s0, %s172
          %s174 = smul.u32 2, %s165
          %s175 = sshll.u32 %s163, 4
          %s176 = int_to_ptr.vmem [resolvable:$true] %s175
          %s177 = sshll.u32 %s174, 4
          %181 = dma.hbm_to_vmem [thread:$0]  (%p170), %s173, %s177, %s176, %s160, 32, 32, 2
        $region20: #{tpu_custom_call.1} parent=15 // pred_fallthru
          _
        // Predicated region
        $region21: #{tpu_custom_call.1} parent=15 // pred_check
          %p182 = pneg %p79
        $region22: #{tpu_custom_call.1} parent=15 // pred_check_branch
          %184 = sbr.rel (%p182) target = $region24
        $region23: #{tpu_custom_call.1} parent=15 // pred_region
          %p185 = scmp.lt.s32.totalorder %s26, 1
          %s186 = scalar_select %p185, %s26, 1
          %s187 = scalar_lea.vmem %s1, %s186
        $region24: #{tpu_custom_call.1} parent=15 // pred_fallthru
          _
      $region16: #{tpu_custom_call.1} parent=5 // pred_fallthru
        _
      %p188 = scmp.le.s32.totalorder 1, %s19
      %p189 = scmp.lt.s32.totalorder %s19, 3
      %p190 = pnand %p188, %p189
      %p191 = pneg %p190
      // Predicated region
      $region25: #{tpu_custom_call.1} parent=5 // pred_check
        _
      $region26: #{tpu_custom_call.1} parent=5 // pred_check_branch
        %193 = sbr.rel (%p190) target = $region28
      $region27: #{tpu_custom_call.1} parent=5 // pred_region
        %s194 = ssub.s32 %s19, 1
        %s195 = sand.u32 %s46, 1
        %s196 = scalar_lea.sflag [#allocation3], %s195
        %s197 = sand.u32 %s46, 1
        %s198 = smul.addr %s197, 8
        %s199 = scalar_lea.vmem [#allocation2], %s198
        // Predicated region
        $region29: #{tpu_custom_call.1} parent=27 // pred_check
          %p200 = pneg %p59
        $region30: #{tpu_custom_call.1} parent=27 // pred_check_branch
          %202 = sbr.rel (%p200) target = $region32
        $region31: #{tpu_custom_call.1} parent=27 // pred_region
          %203 = dma.done %s196, 128
        $region32: #{tpu_custom_call.1} parent=27 // pred_fallthru
          _
        %s204 = sand.u32 %s46, 1
        %s205 = scalar_lea.sflag [#allocation3], %s204
        %s206 = sand.u32 %s46, 1
        %s207 = smul.addr %s206, 8
        %s208 = scalar_lea.vmem [#allocation2], %s207
        %p209 = pneg %p59
        %p210 = pneg %p56
        %p211 = scmp.lt.s32.totalorder %s28, 1
        %s212 = scalar_select %p211, %s28, 1
        %s213 = scalar_lea.vmem %s1, %s212
        %p214 = pneg %p85
        %p215 = pneg %p82
        %p216 = pneg %p111
        %p217 = pneg %p108
        %s218 = sand.u32 %s98, 1
        %s219 = scalar_lea.sflag [#allocation4], %s218
        %s220 = sand.u32 %s98, 1
        %s221 = scalar_lea.vmem [#allocation5], %s220
        %p222 = pneg %p137
        %p223 = pneg %p134
        %s224 = sand.u32 %s124, 1
        %s225 = scalar_lea.sflag [#allocation7], %s224
        %s226 = sand.u32 %s124, 1
        %s227 = scalar_lea.vmem [#allocation6], %s226
        %s228 = smul.u32 4, %s29
        %s229 = ssub.s32 1, %s228
        %s230 = smul.u32 32, %s229
        %p231 = scmp.lt.s32.totalorder %s28, 1
        %s232 = scalar_select %p231, %s28, 1
        %s233 = scalar_lea.vmem %s1, %s232
        %p234 = scmp.eq.s32.totalorder %s29, 0
        // Predicated region
        $region33: #{tpu_custom_call.1} parent=27 // pred_check
          %p235 = pneg %p234
        $region34: #{tpu_custom_call.1} parent=27 // pred_check_branch
          %237 = sbr.rel (%p235) target = $region36
        $region35: #{tpu_custom_call.1} parent=27 // pred_region
          %238 = vst [vmem:[%s221] sm:$0x1] 0.0
          %239 = vst [vmem:[%s227] sm:$0x1] 0.0
        $region36: #{tpu_custom_call.1} parent=27 // pred_fallthru
          _
        %v240 = vld [vmem:[%s199] sm:$0xff]
        %v241 = vld [vmem:[%s233] sm:$0x1]
        %v243 = vlaneseq
        %v244 = vshrl.u32 %v243, 7
        %v245 = vsub.s32 0, %v244
        %v246 = vrot.slane %v241, %v245
        %v248 = vsub.f32 %v240, %v246
        %v249 = vlaneseq
        %v250 = vshrl.u32 %v249, 7
        %s251 = smul.u32 %s29, 8
        %v252 = vstv %s251
        %v253 = vadd.s32 %v250, %v252
        %vm254 = vcmp.lt.s32.totalorder %v253, 2
        %v255 = vsel %vm254, 1, 0
        %vm256 = vcmp.eq.s32.totalorder %v255, 1
        %v257 = vsel %vm256, %v248, 0.0
        %v258 = vld [vmem:[%s221] sm:$0x1]
        %v259 = vrot.slane %v257, 4
        %v260 = vadd.f32 %v257, %v259
        %v261 = vrot.slane %v260, 2
        %v262 = vadd.f32 %v260, %v261
        %v263 = vrot.slane %v262, 1
        %v264 = vadd.f32 %v262, %v263
        %v265 = vadd.f32 %v258, %v264
        %266 = vst [vmem:[%s221] sm:$0x1] %v265
        %v267 = vld [vmem:[%s227] sm:$0x1]
        %v268 = vmul.f32 %v257, %v257
        %v269 = vrot.slane %v268, 4
        %v270 = vadd.f32 %v268, %v269
        %v271 = vrot.slane %v270, 2
        %v272 = vadd.f32 %v270, %v271
        %v273 = vrot.slane %v272, 1
        %v274 = vadd.f32 %v272, %v273
        %v275 = vadd.f32 %v267, %v274
        %276 = vst [vmem:[%s227] sm:$0x1] %v275
        %s277 = sand.u32 %s98, 1
        %s278 = scalar_lea.sflag [#allocation4], %s277
        %s279 = sand.u32 %s98, 1
        %s280 = scalar_lea.vmem [#allocation5], %s279
        %s281 = sand.u32 %s124, 1
        %s282 = scalar_lea.sflag [#allocation7], %s281
        %s283 = sand.u32 %s124, 1
        %s284 = scalar_lea.vmem [#allocation6], %s283
        // Predicated region
        $region37: #{tpu_custom_call.1} parent=27 // pred_check
          %p285 = pneg %p108
        $region38: #{tpu_custom_call.1} parent=27 // pred_check_branch
          %287 = sbr.rel (%p285) target = $region40
        $region39: #{tpu_custom_call.1} parent=27 // pred_region
          %s289 = ssub.s32 16, 16
          %290 = vsyncadd %s278, %s289
          %s291 = smul.addr %s28, 16
          %s292 = scalar_lea.hbm %s2, %s291
          %s294 = sshll.u32 %s280, 4
          %s295 = int_to_ptr.vmem [resolvable:$true] %s294
          %297 = dma.vmem_to_hbm [thread:$0]  %s295, 16, %s292, %s278
        $region40: #{tpu_custom_call.1} parent=27 // pred_fallthru
          _
        // Predicated region
        $region41: #{tpu_custom_call.1} parent=27 // pred_check
          %p298 = pneg %p134
        $region42: #{tpu_custom_call.1} parent=27 // pred_check_branch
          %300 = sbr.rel (%p298) target = $region44
        $region43: #{tpu_custom_call.1} parent=27 // pred_region
          %s302 = ssub.s32 16, 16
          %303 = vsyncadd %s282, %s302
          %s304 = smul.addr %s28, 16
          %s305 = scalar_lea.hbm %s3, %s304
          %s307 = sshll.u32 %s284, 4
          %s308 = int_to_ptr.vmem [resolvable:$true] %s307
          %310 = dma.vmem_to_hbm [thread:$0]  %s308, 16, %s305, %s282
        $region44: #{tpu_custom_call.1} parent=27 // pred_fallthru
          _
      $region28: #{tpu_custom_call.1} parent=5 // pred_fallthru
        _
      %p311 = scmp.le.s32.totalorder 2, %s19
      // Predicated region
      $region45: #{tpu_custom_call.1} parent=5 // pred_check
        %p312 = pneg %p311
      $region46: #{tpu_custom_call.1} parent=5 // pred_check_branch
        %314 = sbr.rel (%p312) target = $region48
      $region47: #{tpu_custom_call.1} parent=5 // pred_region
        %s315 = ssub.s32 %s19, 2
        // Predicated region
        $region49: #{tpu_custom_call.1} parent=47 // pred_check
          %p316 = pneg %p114
        $region50: #{tpu_custom_call.1} parent=47 // pred_check_branch
          %318 = sbr.rel (%p316) target = $region52
        $region51: #{tpu_custom_call.1} parent=47 // pred_region
          %s319 = sand.u32 %s99, 1
          %s320 = scalar_lea.sflag [#allocation4], %s319
          %s321 = sand.u32 %s99, 1
          %s322 = scalar_lea.vmem [#allocation5], %s321
          %323 = dma.done %s320, 16
        $region52: #{tpu_custom_call.1} parent=47 // pred_fallthru
          _
        // Predicated region
        $region53: #{tpu_custom_call.1} parent=47 // pred_check
          %p324 = pneg %p140
        $region54: #{tpu_custom_call.1} parent=47 // pred_check_branch
          %326 = sbr.rel (%p324) target = $region56
        $region55: #{tpu_custom_call.1} parent=47 // pred_region
          %s327 = sand.u32 %s125, 1
          %s328 = scalar_lea.sflag [#allocation7], %s327
          %s329 = sand.u32 %s125, 1
          %s330 = scalar_lea.vmem [#allocation6], %s329
          %331 = dma.done %s328, 16
        $region56: #{tpu_custom_call.1} parent=47 // pred_fallthru
          _
      $region48: #{tpu_custom_call.1} parent=5 // pred_fallthru
        _
    $region6: #{tpu_custom_call.1} parent=1 // loop_footer
      %s23 = sadd.s32 1, %s19
    $region7: #{tpu_custom_call.1} parent=1 // loop_footer_branch
      %18 = sbr.rel target = $region3
    $region8: #{tpu_custom_call.1} parent=1 // loop_exit
      _
    %332 = vsyncpa [#allocation3], 1
    %s333 = scalar_lea.sflag [#allocation3], 1
    %334 = vsyncpa %s333, 1
    %335 = vsyncpa [#allocation4], 1
    %s336 = scalar_lea.sflag [#allocation4], 1
    %337 = vsyncpa %s336, 1
    %338 = vsyncpa [#allocation7], 1
    %s339 = scalar_lea.sflag [#allocation7], 1
    %340 = vsyncpa %s339, 1

</llo_original>
